<compile_context>
chip_gen: v6e
topology: v6e:2x2x1
jax: 0.10.0
libtpu: 0.0.40
codegen_flags: <defaults>
</compile_context>

<pallas_src>
import functools

import jax
import jax.numpy as jnp
from jax import lax
from jax.experimental import pallas as pl
from jax.experimental.pallas import tpu as pltpu


def _round_up(v, m):
    return (v + m - 1) // m * m


def _block_kernel(x_ref, w_ref, gb_ref, o_ref, *,
                  cb, k_size, l_out, l_out_pad, eps, pre_strided):
    # x_ref : (1, C_in_pad, L_x)             bf16 zero-padded input   (stride == 1)
    #         (1, K, C_in_pad, L_out_pad)    bf16 pre-strided taps    (stride > 1)
    # w_ref : (K, 2*cb, C_in_pad)            bf16; rows [0:cb] = GLU 'a' half,
    #                                        rows [cb:2cb] = 'g' half
    # gb_ref: (1, 2, 2*cb, 1)                f32 gamma(0)/beta(1), channel-on-sublane
    # o_ref : (1, cb, L_out_pad)             GLU output block

    # ---- conv as K accumulating MXU matmuls (no materialized im2col) ----
    def tap(k):
        if pre_strided:
            return x_ref[0, k]                          # (C_in_pad, L_out_pad)
        return x_ref[0, :, k:k + l_out_pad]             # shifted window, stride 1

    acc = jnp.dot(w_ref[0], tap(0), preferred_element_type=jnp.float32)
    for k in range(1, k_size):                          # static unroll
        acc += jnp.dot(w_ref[k], tap(k), preferred_element_type=jnp.float32)
    # acc: (2*cb, L_out_pad) f32.  Conv bias intentionally omitted: instance
    # norm is invariant to a per-channel additive constant.

    # ---- masked two-pass instance-norm statistics over the valid lanes ----
    inv_n = 1.0 / l_out
    inv_nm1 = 1.0 / max(l_out - 1, 1)                   # torch .var(): N-1 denom
    if l_out == l_out_pad:
        mean = jnp.sum(acc, axis=1, keepdims=True) * inv_n
        cen = acc - mean
        var = jnp.sum(cen * cen, axis=1, keepdims=True) * inv_nm1
    else:
        lane = lax.broadcasted_iota(jnp.int32, (1, l_out_pad), 1)
        valid = (lane < l_out).astype(jnp.float32)
        mean = jnp.sum(acc * valid, axis=1, keepdims=True) * inv_n
        cen = acc - mean
        var = jnp.sum((cen * cen) * valid, axis=1, keepdims=True) * inv_nm1

    y = cen * lax.rsqrt(var + eps)
    y = gb_ref[0, 0] * y + gb_ref[0, 1]                 # per-sample affine (f32)

    # ---- GLU: split at the tile-aligned sublane boundary cb ----
    a = y[:cb]
    g = y[cb:]
    o_ref[0] = (a * jax.nn.sigmoid(g)).astype(o_ref.dtype)


def block_forward(x, c, params, *, stride=1, padding=0, eps=1e-5,
                  cb_max=128, mxu_dtype=jnp.bfloat16):
    """x: (B, C_in, L) float, c: (B,) int32 codes. Returns (B, C_out//2, L_out)."""
    w, _bias, gamma_emb, beta_emb = params   # conv bias is norm-invariant -> unused
    B, C_in, L = x.shape
    C_out, _, K = w.shape
    half = C_out // 2

    L_out = (L + 2 * padding - K) // stride + 1
    L_out_pad = _round_up(max(L_out, 1), 128)           # lane-dense matmul / vst
    C_in_pad = _round_up(C_in, 8)                       # sublane-aligned contraction
    cb = min(_round_up(half, 8), _round_up(cb_max, 8))  # channel block (sublanes)
    n_cb = pl.cdiv(half, cb)
    half_pad = n_cb * cb                                # padded GLU-half channels
    pre_strided = stride > 1

    # ---------- glue: pad / re-lay inputs into MXU- & lane-friendly layouts ----------
    if pre_strided:
        L_x = (K - 1) + stride * (L_out_pad - 1) + 1
    else:
        L_x = (K - 1) + L_out_pad
    right = max(L_x - L - padding, 0)
    x_p = jnp.pad(x, ((0, 0), (0, C_in_pad - C_in), (padding, right)))[:, :, :L_x]
    if pre_strided:
        # Pre-stride host-side so the kernel never does strided lane gathers.
        # TODO(synk): for very long L, DMA the strided taps from a pl.ANY input
        # into a VMEM scratch instead of materializing (B, K, C_in_pad, L_out_pad).
        taps = [lax.slice(x_p, (0, 0, k),
                          (B, C_in_pad, k + stride * (L_out_pad - 1) + 1),
                          (1, 1, stride)) for k in range(K)]
        x_p = jnp.stack(taps, axis=1)                   # (B, K, C_in_pad, L_out_pad)
    x_p = x_p.astype(mxu_dtype)                         # bf16 operands, half the HBM traffic

    # Conv weight: (C_out, C_in, K) -> (K, 2*half_pad, C_in_pad), GLU halves
    # interleaved per channel block of size cb so each grid step's weight block
    # holds its 'a' rows and the matching 'g' rows contiguously.
    w_t = jnp.transpose(w, (2, 0, 1))                   # (K, C_out, C_in)
    w_t = jnp.pad(w_t, ((0, 0), (0, 0), (0, C_in_pad - C_in)))
    wa = jnp.pad(w_t[:, :half], ((0, 0), (0, half_pad - half), (0, 0)))
    wg = jnp.pad(w_t[:, half:], ((0, 0), (0, half_pad - half), (0, 0)))
    w3 = jnp.stack([wa.reshape(K, n_cb, cb, C_in_pad),
                    wg.reshape(K, n_cb, cb, C_in_pad)], axis=2)
    w3 = w3.reshape(K, 2 * half_pad, C_in_pad).astype(mxu_dtype)

    # Per-sample gamma / beta (embedding lookup is glue), same interleaving,
    # channel-on-sublane so the lane broadcast is free; one combined input.
    def interleave(v):                                  # (B, C_out) -> (B, 2*half_pad)
        va = jnp.pad(v[:, :half], ((0, 0), (0, half_pad - half)))
        vg = jnp.pad(v[:, half:], ((0, 0), (0, half_pad - half)))
        return jnp.stack([va.reshape(B, n_cb, cb),
                          vg.reshape(B, n_cb, cb)], axis=2).reshape(B, 2 * half_pad)

    gamma = interleave(gamma_emb[c].astype(jnp.float32))
    beta = interleave(beta_emb[c].astype(jnp.float32))
    gb = jnp.stack([gamma, beta], axis=1)[..., None]    # (B, 2, 2*half_pad, 1)

    # ---------- pallas_call ----------
    if pre_strided:
        x_spec = pl.BlockSpec((1, K, C_in_pad, L_out_pad), lambda b, j: (b, 0, 0, 0))
        x_block_elems = K * C_in_pad * L_out_pad
    else:
        x_spec = pl.BlockSpec((1, C_in_pad, L_x), lambda b, j: (b, 0, 0))
        x_block_elems = C_in_pad * L_x

    kernel = functools.partial(_block_kernel, cb=cb, k_size=K, l_out=L_out,
                               l_out_pad=L_out_pad, eps=eps,
                               pre_strided=pre_strided)

    esize = jnp.dtype(mxu_dtype).itemsize
    osize = jnp.dtype(x.dtype).itemsize
    vmem_est = (2 * x_block_elems * esize                     # x block, double-buffered
                + 2 * K * 2 * cb * C_in_pad * esize           # weight block
                + 2 * 2 * 2 * cb * 4                          # gamma/beta block
                + 2 * cb * L_out_pad * osize                  # output block
                + 8 * 2 * cb * L_out_pad * 4)                 # f32 acc / cen / y temps
    vmem_limit = int(min(max(2 * vmem_est, 32 << 20), 64 << 20))

    out = pl.pallas_call(
        kernel,
        out_shape=jax.ShapeDtypeStruct((B, half_pad, L_out_pad), x.dtype),
        grid=(B, n_cb),
        in_specs=[
            x_spec,                                              # constant across j -> no re-DMA
            pl.BlockSpec((K, 2 * cb, C_in_pad), lambda b, j: (0, j, 0)),
            pl.BlockSpec((1, 2, 2 * cb, 1), lambda b, j: (b, 0, j, 0)),
        ],
        out_specs=pl.BlockSpec((1, cb, L_out_pad), lambda b, j: (b, j, 0)),
        compiler_params=pltpu.CompilerParams(
            dimension_semantics=("parallel", "parallel"),
            vmem_limit_bytes=vmem_limit),
    )(x_p, w3, gb)

    # Crop sublane / lane padding back to the logical shape.
    return out[:, :half, :L_out]


def _reference(x, c, params, *, stride, padding, eps):
    """Plain-JAX mirror of the PyTorch forward (f32 math)."""
    w, bias, gamma_emb, beta_emb = params
    y = lax.conv_general_dilated(
        x, w, window_strides=(stride,), padding=[(padding, padding)],
        dimension_numbers=('NCH', 'OIH', 'NCH'),
        precision=lax.Precision.HIGHEST)
    y = y + bias[None, :, None]
    mean = y.mean(axis=2, keepdims=True)
    var = y.var(axis=2, keepdims=True, ddof=1)          # torch .var(): unbiased
    y = (y - mean) / jnp.sqrt(var + eps)
    g = gamma_emb[c][:, :, None]
    b = beta_emb[c][:, :, None]
    y = g * y + b
    half = y.shape[1] // 2
    return y[:, :half] * jax.nn.sigmoid(y[:, half:])


if __name__ == "__main__":
    # Module hyper-params (small, consistent with the PyTorch forward).
    B, C_in, C_out, K, L = 2, 4, 8, 3, 16
    stride, padding, code_dim, eps = 1, 1, 8, 1e-5

    key = jax.random.PRNGKey(0)
    k_x, k_w, k_b, k_g, k_be, k_c = jax.random.split(key, 6)

    # Deterministic synthetic parameters (shapes match nn.Conv1d / nn.Embedding).
    fan_in = C_in * K
    bound = 1.0 / (fan_in ** 0.5)
    w = jax.random.uniform(k_w, (C_out, C_in, K), jnp.float32, -bound, bound)
    bias = jax.random.uniform(k_b, (C_out,), jnp.float32, -bound, bound)
    gamma_emb = jax.random.normal(k_g, (code_dim, C_out), jnp.float32)
    beta_emb = jax.random.normal(k_be, (code_dim, C_out), jnp.float32)
    params = (w, bias, gamma_emb, beta_emb)

    x = jax.random.normal(k_x, (B, C_in, L), jnp.float32)
    c = jax.random.randint(k_c, (B,), 0, code_dim)

    out = block_forward(x, c, params, stride=stride, padding=padding, eps=eps)
    out = jax.block_until_ready(out)
    assert out.shape == (B, C_out // 2, (L + 2 * padding - K) // stride + 1)

    # The kernel deliberately feeds the MXU bf16 operands; compare against the
    # f32 reference evaluated on bf16-rounded x / w so only the kernel math
    # (f32 accumulate, norm, affine, GLU, bias-drop identity) is being tested.
    x_q = x.astype(jnp.bfloat16).astype(jnp.float32)
    w_q = w.astype(jnp.bfloat16).astype(jnp.float32)
    ref = _reference(x_q, c, (w_q, bias, gamma_emb, beta_emb),
                     stride=stride, padding=padding, eps=eps)
    assert jnp.allclose(out, ref, rtol=2e-3, atol=2e-3), "mismatch vs reference"

    print("KERNEL_OK")
</pallas_src>

<mosaic_0001>
module attributes {stable_mosaic.version = 11 : i64} {
  func.func @_block_kernel(%arg0: i32, %arg1: i32, %arg2: memref<1x8x130xbf16, #tpu.memory_space<vmem>>, %arg3: memref<3x16x8xbf16, #tpu.memory_space<vmem>>, %arg4: memref<1x2x16x1xf32, #tpu.memory_space<vmem>>, %arg5: memref<1x8x128xf32, #tpu.memory_space<vmem>>) attributes {dimension_semantics = [#tpu.dimension_semantics<parallel>, #tpu.dimension_semantics<parallel>], iteration_bounds = array<i64: 2, 1>, scalar_prefetch = 0 : i64, scratch_operands = 0 : i64, tpu.core_type = #tpu.core_type<tc>, window_params = [{transform_indices = @transform_0, window_bounds = array<i64: 1, 8, 130>}, {transform_indices = @transform_1, window_bounds = array<i64: 3, 16, 8>}, {transform_indices = @transform_2, window_bounds = array<i64: 1, 2, 16, 1>}, {transform_indices = @transform_3, window_bounds = array<i64: 1, 8, 128>}]} {
    %c0 = arith.constant 0 : index
    %c0_0 = arith.constant 0 : index
    %c0_1 = arith.constant 0 : index
    %0 = vector.load %arg3[%c0, %c0_0, %c0_1] : memref<3x16x8xbf16, #tpu.memory_space<vmem>>, vector<1x16x8xbf16>
    %1 = vector.shape_cast %0 : vector<1x16x8xbf16> to vector<16x8xbf16>
    %c0_2 = arith.constant 0 : index
    %c0_3 = arith.constant 0 : index
    %c0_4 = arith.constant 0 : index
    %2 = vector.load %arg2[%c0_2, %c0_3, %c0_4] : memref<1x8x130xbf16, #tpu.memory_space<vmem>>, vector<1x8x128xbf16>
    %3 = vector.shape_cast %2 : vector<1x8x128xbf16> to vector<8x128xbf16>
    %cst = arith.constant dense<0.000000e+00> : vector<16x128xf32>
    %4 = tpu.matmul %1, %3, %cst {dimension_numbers = #tpu.dot_dimension_numbers<[1], [0], [0], [1], [0, 0, 1, 1], [], []>} : vector<16x8xbf16>, vector<8x128xbf16>, vector<16x128xf32> -> vector<16x128xf32>
    %c1 = arith.constant 1 : index
    %c0_5 = arith.constant 0 : index
    %c0_6 = arith.constant 0 : index
    %5 = vector.load %arg3[%c1, %c0_5, %c0_6] : memref<3x16x8xbf16, #tpu.memory_space<vmem>>, vector<1x16x8xbf16>
    %6 = vector.shape_cast %5 : vector<1x16x8xbf16> to vector<16x8xbf16>
    %c0_7 = arith.constant 0 : index
    %c0_8 = arith.constant 0 : index
    %c1_9 = arith.constant 1 : index
    %7 = vector.load %arg2[%c0_7, %c0_8, %c1_9] : memref<1x8x130xbf16, #tpu.memory_space<vmem>>, vector<1x8x128xbf16>
    %8 = vector.shape_cast %7 : vector<1x8x128xbf16> to vector<8x128xbf16>
    %cst_10 = arith.constant dense<0.000000e+00> : vector<16x128xf32>
    %9 = tpu.matmul %6, %8, %cst_10 {dimension_numbers = #tpu.dot_dimension_numbers<[1], [0], [0], [1], [0, 0, 1, 1], [], []>} : vector<16x8xbf16>, vector<8x128xbf16>, vector<16x128xf32> -> vector<16x128xf32>
    %10 = arith.addf %4, %9 : vector<16x128xf32>
    %c2 = arith.constant 2 : index
    %c0_11 = arith.constant 0 : index
    %c0_12 = arith.constant 0 : index
    %11 = vector.load %arg3[%c2, %c0_11, %c0_12] : memref<3x16x8xbf16, #tpu.memory_space<vmem>>, vector<1x16x8xbf16>
    %12 = vector.shape_cast %11 : vector<1x16x8xbf16> to vector<16x8xbf16>
    %c0_13 = arith.constant 0 : index
    %c0_14 = arith.constant 0 : index
    %c2_15 = arith.constant 2 : index
    %13 = vector.load %arg2[%c0_13, %c0_14, %c2_15] : memref<1x8x130xbf16, #tpu.memory_space<vmem>>, vector<1x8x128xbf16>
    %14 = vector.shape_cast %13 : vector<1x8x128xbf16> to vector<8x128xbf16>
    %cst_16 = arith.constant dense<0.000000e+00> : vector<16x128xf32>
    %15 = tpu.matmul %12, %14, %cst_16 {dimension_numbers = #tpu.dot_dimension_numbers<[1], [0], [0], [1], [0, 0, 1, 1], [], []>} : vector<16x8xbf16>, vector<8x128xbf16>, vector<16x128xf32> -> vector<16x128xf32>
    %16 = arith.addf %10, %15 : vector<16x128xf32>
    %17 = tpu.iota {dimensions = array<i32: 1>} : vector<1x128xi32>
    %c16_i32 = arith.constant 16 : i32
    %18 = vector.broadcast %c16_i32 : i32 to vector<1x128xi32>
    %19 = arith.cmpi slt, %17, %18 : vector<1x128xi32>
    %20 = arith.extui %19 : vector<1x128xi1> to vector<1x128xi32>
    %21 = arith.sitofp %20 : vector<1x128xi32> to vector<1x128xf32>
    %22 = vector.broadcast %21 : vector<1x128xf32> to vector<16x128xf32>
    %23 = arith.mulf %16, %22 : vector<16x128xf32>
    %cst_17 = arith.constant dense<0.000000e+00> : vector<16xf32>
    %24 = vector.multi_reduction <add>, %23, %cst_17 [1] : vector<16x128xf32> to vector<16xf32>
    %25 = vector.shape_cast %24 : vector<16xf32> to vector<16x1xf32>
    %cst_18 = arith.constant 6.250000e-02 : f32
    %26 = vector.broadcast %cst_18 : f32 to vector<16x1xf32>
    %27 = arith.mulf %25, %26 : vector<16x1xf32>
    %28 = vector.broadcast %27 : vector<16x1xf32> to vector<16x128xf32>
    %29 = arith.subf %16, %28 : vector<16x128xf32>
    %30 = arith.mulf %29, %29 : vector<16x128xf32>
    %31 = vector.broadcast %21 : vector<1x128xf32> to vector<16x128xf32>
    %32 = arith.mulf %30, %31 : vector<16x128xf32>
    %cst_19 = arith.constant dense<0.000000e+00> : vector<16xf32>
    %33 = vector.multi_reduction <add>, %32, %cst_19 [1] : vector<16x128xf32> to vector<16xf32>
    %34 = vector.shape_cast %33 : vector<16xf32> to vector<16x1xf32>
    %cst_20 = arith.constant 0.0666666701 : f32
    %35 = vector.broadcast %cst_20 : f32 to vector<16x1xf32>
    %36 = arith.mulf %34, %35 : vector<16x1xf32>
    %cst_21 = arith.constant 9.99999974E-6 : f32
    %37 = vector.broadcast %cst_21 : f32 to vector<16x1xf32>
    %38 = arith.addf %36, %37 : vector<16x1xf32>
    %39 = math.rsqrt %38 : vector<16x1xf32>
    %40 = vector.broadcast %39 : vector<16x1xf32> to vector<16x128xf32>
    %41 = arith.mulf %29, %40 : vector<16x128xf32>
    %c0_22 = arith.constant 0 : index
    %c0_23 = arith.constant 0 : index
    %c0_24 = arith.constant 0 : index
    %c0_25 = arith.constant 0 : index
    %42 = vector.load %arg4[%c0_22, %c0_23, %c0_24, %c0_25] : memref<1x2x16x1xf32, #tpu.memory_space<vmem>>, vector<1x1x16x1xf32>
    %43 = vector.shape_cast %42 : vector<1x1x16x1xf32> to vector<16x1xf32>
    %44 = vector.broadcast %43 : vector<16x1xf32> to vector<16x128xf32>
    %45 = arith.mulf %44, %41 : vector<16x128xf32>
    %c0_26 = arith.constant 0 : index
    %c1_27 = arith.constant 1 : index
    %c0_28 = arith.constant 0 : index
    %c0_29 = arith.constant 0 : index
    %46 = vector.load %arg4[%c0_26, %c1_27, %c0_28, %c0_29] : memref<1x2x16x1xf32, #tpu.memory_space<vmem>>, vector<1x1x16x1xf32>
    %47 = vector.shape_cast %46 : vector<1x1x16x1xf32> to vector<16x1xf32>
    %48 = vector.broadcast %47 : vector<16x1xf32> to vector<16x128xf32>
    %49 = arith.addf %45, %48 : vector<16x128xf32>
    %50 = vector.extract_strided_slice %49 {offsets = [0, 0], sizes = [8, 128], strides = [1, 1]} : vector<16x128xf32> to vector<8x128xf32>
    %51 = vector.extract_strided_slice %49 {offsets = [8, 0], sizes = [8, 128], strides = [1, 1]} : vector<16x128xf32> to vector<8x128xf32>
    %52 = arith.negf %51 : vector<8x128xf32>
    %53 = math.exp %52 : vector<8x128xf32>
    %cst_30 = arith.constant 1.000000e+00 : f32
    %54 = vector.broadcast %cst_30 : f32 to vector<8x128xf32>
    %55 = arith.addf %54, %53 : vector<8x128xf32>
    %56 = arith.divf %54, %55 : vector<8x128xf32>
    %57 = arith.mulf %50, %56 : vector<8x128xf32>
    %c0_31 = arith.constant 0 : index
    %c0_32 = arith.constant 0 : index
    %c0_33 = arith.constant 0 : index
    %58 = vector.load %arg5[%c0_31, %c0_32, %c0_33] : memref<1x8x128xf32, #tpu.memory_space<vmem>>, vector<1x8x128xf32>
    %59 = vector.shape_cast %58 : vector<1x8x128xf32> to vector<8x128xf32>
    %60 = vector.shape_cast %57 : vector<8x128xf32> to vector<1x8x128xf32>
    tpu.vector_store %arg5[%c0_31, %c0_32, %c0_33], %60 {strides = array<i32>} : memref<1x8x128xf32, #tpu.memory_space<vmem>>, vector<1x8x128xf32>,
    return
  }
  func.func @transform_0(%arg0: i32, %arg1: i32) -> (i32, i32, i32) {
    %c0_i32 = arith.constant 0 : i32
    %c0_i32_0 = arith.constant 0 : i32
    %c0_i32_1 = arith.constant 0 : i32
    return %arg0, %c0_i32, %c0_i32_0 : i32, i32, i32
  }
  func.func @transform_1(%arg0: i32, %arg1: i32) -> (i32, i32, i32) {
    %c0_i32 = arith.constant 0 : i32
    %c0_i32_0 = arith.constant 0 : i32
    %c0_i32_1 = arith.constant 0 : i32
    return %c0_i32, %arg1, %c0_i32_0 : i32, i32, i32
  }
  func.func @transform_2(%arg0: i32, %arg1: i32) -> (i32, i32, i32, i32) {
    %c0_i32 = arith.constant 0 : i32
    %c0_i32_0 = arith.constant 0 : i32
    %c0_i32_1 = arith.constant 0 : i32
    return %arg0, %c0_i32, %arg1, %c0_i32_0 : i32, i32, i32, i32
  }
  func.func @transform_3(%arg0: i32, %arg1: i32) -> (i32, i32, i32) {
    %c0_i32 = arith.constant 0 : i32
    %c0_i32_0 = arith.constant 0 : i32
    return %arg0, %arg1, %c0_i32 : i32, i32, i32
  }
}

</mosaic_0001>

<llo_original>
// kernel: tpu_custom_call.1
$region0: #{tpu_custom_call.1}
  #allocation0 [shape = 'u32[]', space=smem, size = 0x4, offset = 0x4, fixed_abs, tag = 'smem constant byte address 0x4 - core index']
  #allocation1 [shape = 'u32[144,128]{1,0:T(1,128)}', space=vmem, size = 0x12000, scoped, tag = 'internal scratch']
  %s0 = inlined_call_operand.vmem [shape: bf16[2,8,130], index: 0, kind: input, shape index: {}]
  %s1 = inlined_call_operand.vmem [shape: bf16[3,16,8], index: 1, kind: input, shape index: {}]
  %s2 = inlined_call_operand.vmem [shape: f32[2,2,16,1], index: 2, kind: input, shape index: {}]
  %s3 = inlined_call_operand.hbm [shape: f32[2,8,128], index: 3, kind: output, shape index: {}]
  %s4 = sld [smem:[#allocation0]]
  $region45: #{tpu_custom_call.1} parent=0
    _
  %s6 = ssub.s32 1, %s4
  %s7 = scalar_select 0, %s6, %s4
  $region1: #{tpu_custom_call.1} parent=0
    #allocation2 [shape = 'u8[8192]{0}', space=vmem, size = 0x2000, scoped, tag = 'output window, operand 0']
    #allocation3 [shape = 's32[2]{0}', space=sflag, size = 0x8, scoped, tag = 'scoped memory for tpu_custom_call.1']
    %8 = vsyncpa [#allocation3], 0
    %s9 = scalar_lea.sflag [#allocation3], 1
    %10 = vsyncpa %s9, 0
    loop: start=0, step=1, limit=4
    $region2: #{tpu_custom_call.1} parent=1 // loop_pre_header
      _
    $region3: #{tpu_custom_call.1} parent=1 // loop_header
      %s12 = sphi 0, %s16
      %p13 = scmp.ge.s32.totalorder %s12, 4
      %s19 = sphi 0, %s31
      %s20 = sphi 0, %s27
      %s21 = sphi 0, %s19
      %s22 = sphi 0, %s20
      %s23 = sphi 0, %s21
      %s24 = sphi 0, %s22
      %s34 = sphi 0, %s36
      %s37 = sphi 0, %s34
      %s38 = sphi 0, %s37
      %s54 = sphi 0, %s38
      %s60 = sphi 0, %s62
      %s63 = sphi 0, %s60
      %s64 = sphi 0, %s63
      %s80 = sphi 0, %s64
      %s88 = sphi 0, %s90
      %s91 = sphi 0, %s88
      %s92 = sphi 0, %s91
      %s108 = sphi 0, %s92
      %s116 = sphi 0, %s118
      %s119 = sphi 0, %s116
      %s120 = sphi 0, %s119
      %s136 = sphi 0, %s120
    $region4: #{tpu_custom_call.1} parent=1 // loop_header_branch
      %15 = sbr.rel (%p13) target = $region8
    $region5: #{tpu_custom_call.1} parent=1 // loop_body
      %s17 = ssub.s32 %s12, 1
      %s18 = ssub.s32 %s12, 2
      %s25 = sadd.s32 1, %s20
      %p26 = scmp.ge.s32.totalorder %s25, 1
      %s27 = scalar_select %p26, 0, %s25
      %s28 = sadd.s32 1, %s19
      %s29 = scalar_select %p26, %s28, %s19
      %p30 = scmp.ge.s32.totalorder %s29, 2
      %s31 = scalar_select %p30, 0, %s29
      %s32 = ssub.s32 %s19, %s31
      %p33 = scmp.eq.s32.totalorder %s32, 0
      %s35 = sadd.s32 %s34, 1
      %s36 = scalar_select %p33, %s34, %s35
      %p39 = pneg %p33
      %p40 = scmp.eq.s32.totalorder %s12, 1
      %p41 = por %p39, %p40
      %p42 = scmp.ne.s32.totalorder %s34, %s37
      %p43 = scmp.eq.s32.totalorder %s12, 0
      %p44 = por %p42, %p43
      %p45 = scmp.ne.s32.totalorder %s34, %s37
      %p46 = scmp.eq.s32.totalorder %s17, 1
      %p47 = por %p45, %p46
      %p48 = scmp.ne.s32.totalorder %s37, %s38
      %p49 = scmp.eq.s32.totalorder %s17, 0
      %p50 = por %p48, %p49
      %p51 = scmp.ne.s32.totalorder %s37, %s38
      %p52 = scmp.eq.s32.totalorder %s18, 1
      %p53 = por %p51, %p52
      %p55 = scmp.ne.s32.totalorder %s38, %s54
      %p56 = scmp.eq.s32.totalorder %s18, 0
      %p57 = por %p55, %p56
      %s58 = ssub.s32 %s20, %s27
      %p59 = scmp.eq.s32.totalorder %s58, 0
      %s61 = sadd.s32 %s60, 1
      %s62 = scalar_select %p59, %s60, %s61
      %p65 = pneg %p59
      %p66 = scmp.eq.s32.totalorder %s12, 1
      %p67 = por %p65, %p66
      %p68 = scmp.ne.s32.totalorder %s60, %s63
      %p69 = scmp.eq.s32.totalorder %s12, 0
      %p70 = por %p68, %p69
      %p71 = scmp.ne.s32.totalorder %s60, %s63
      %p72 = scmp.eq.s32.totalorder %s17, 1
      %p73 = por %p71, %p72
      %p74 = scmp.ne.s32.totalorder %s63, %s64
      %p75 = scmp.eq.s32.totalorder %s17, 0
      %p76 = por %p74, %p75
      %p77 = scmp.ne.s32.totalorder %s63, %s64
      %p78 = scmp.eq.s32.totalorder %s18, 1
      %p79 = por %p77, %p78
      %p81 = scmp.ne.s32.totalorder %s64, %s80
      %p82 = scmp.eq.s32.totalorder %s18, 0
      %p83 = por %p81, %p82
      %s84 = ssub.s32 %s19, %s31
      %s85 = ssub.s32 %s20, %s27
      %s86 = sor.u32 %s84, %s85
      %p87 = scmp.eq.s32.totalorder %s86, 0
      %s89 = sadd.s32 %s88, 1
      %s90 = scalar_select %p87, %s88, %s89
      %p93 = pneg %p87
      %p94 = scmp.eq.s32.totalorder %s12, 1
      %p95 = por %p93, %p94
      %p96 = scmp.ne.s32.totalorder %s88, %s91
      %p97 = scmp.eq.s32.totalorder %s12, 0
      %p98 = por %p96, %p97
      %p99 = scmp.ne.s32.totalorder %s88, %s91
      %p100 = scmp.eq.s32.totalorder %s17, 1
      %p101 = por %p99, %p100
      %p102 = scmp.ne.s32.totalorder %s91, %s92
      %p103 = scmp.eq.s32.totalorder %s17, 0
      %p104 = por %p102, %p103
      %p105 = scmp.ne.s32.totalorder %s91, %s92
      %p106 = scmp.eq.s32.totalorder %s18, 1
      %p107 = por %p105, %p106
      %p109 = scmp.ne.s32.totalorder %s92, %s108
      %p110 = scmp.eq.s32.totalorder %s18, 0
      %p111 = por %p109, %p110
      %s112 = ssub.s32 %s19, %s31
      %s113 = ssub.s32 %s20, %s27
      %s114 = sor.u32 %s112, %s113
      %p115 = scmp.eq.s32.totalorder %s114, 0
      %s117 = sadd.s32 %s116, 1
      %s118 = scalar_select %p115, %s116, %s117
      %p121 = pneg %p115
      %p122 = scmp.eq.s32.totalorder %s12, 1
      %p123 = por %p121, %p122
      %p124 = scmp.ne.s32.totalorder %s116, %s119
      %p125 = scmp.eq.s32.totalorder %s12, 0
      %p126 = por %p124, %p125
      %p127 = scmp.ne.s32.totalorder %s116, %s119
      %p128 = scmp.eq.s32.totalorder %s17, 1
      %p129 = por %p127, %p128
      %p130 = scmp.ne.s32.totalorder %s119, %s120
      %p131 = scmp.eq.s32.totalorder %s17, 0
      %p132 = por %p130, %p131
      %p133 = scmp.ne.s32.totalorder %s119, %s120
      %p134 = scmp.eq.s32.totalorder %s18, 1
      %p135 = por %p133, %p134
      %p137 = scmp.ne.s32.totalorder %s120, %s136
      %p138 = scmp.eq.s32.totalorder %s18, 0
      %p139 = por %p137, %p138
      %p140 = scmp.le.s32.totalorder 1, %s12
      %p141 = scmp.lt.s32.totalorder %s12, 3
      %p142 = pnand %p140, %p141
      %p143 = pneg %p142
      // Predicated region
      $region9: #{tpu_custom_call.1} parent=5 // pred_check
        _
      $region10: #{tpu_custom_call.1} parent=5 // pred_check_branch
        %145 = sbr.rel (%p142) target = $region12
      $region11: #{tpu_custom_call.1} parent=5 // pred_region
        %s146 = ssub.s32 %s12, 1
        // Predicated region
        $region13: #{tpu_custom_call.1} parent=11 // pred_check
          %p147 = pneg %p76
        $region14: #{tpu_custom_call.1} parent=11 // pred_check_branch
          %149 = sbr.rel (%p147) target = $region16
        $region15: #{tpu_custom_call.1} parent=11 // pred_region
          %s150 = smul.u32 2, %s22
          %p151 = scmp.lt.s32.totalorder %s150, 1
          %s152 = scalar_select %p151, %s150, 1
          %s153 = smul.addr %s152, 4
          %s154 = scalar_lea.vmem %s1, %s153
          %s155 = smul.u32 2, %s22
        $region16: #{tpu_custom_call.1} parent=11 // pred_fallthru
          _
      $region12: #{tpu_custom_call.1} parent=5 // pred_fallthru
        _
      %p156 = scmp.lt.s32.totalorder %s12, 2
      // Predicated region
      $region17: #{tpu_custom_call.1} parent=5 // pred_check
        %p157 = pneg %p156
      $region18: #{tpu_custom_call.1} parent=5 // pred_check_branch
        %159 = sbr.rel (%p157) target = $region20
      $region19: #{tpu_custom_call.1} parent=5 // pred_region
        // Predicated region
        $region21: #{tpu_custom_call.1} parent=19 // pred_check
          %p160 = pneg %p44
        $region22: #{tpu_custom_call.1} parent=19 // pred_check_branch
          %162 = sbr.rel (%p160) target = $region24
        $region23: #{tpu_custom_call.1} parent=19 // pred_region
          %p163 = scmp.lt.s32.totalorder %s19, 1
          %s164 = scalar_select %p163, %s19, 1
          %s165 = smul.addr %s164, 2
          %s166 = smul.addr %s165, 4
          %s167 = scalar_lea.vmem %s0, %s166
        $region24: #{tpu_custom_call.1} parent=19 // pred_fallthru
          _
        // Predicated region
        $region25: #{tpu_custom_call.1} parent=19 // pred_check
          %p168 = pneg %p98
        $region26: #{tpu_custom_call.1} parent=19 // pred_check_branch
          %170 = sbr.rel (%p168) target = $region28
        $region27: #{tpu_custom_call.1} parent=19 // pred_region
          %s171 = smul.u32 2, %s20
          %p172 = scmp.lt.s32.totalorder %s19, 1
          %s173 = scalar_select %p172, %s19, 1
          %p174 = scmp.lt.s32.totalorder %s171, 1
          %s175 = scalar_select %p174, %s171, 1
          %s176 = smul.addr %s173, 4
          %s177 = sadd.s32 %s175, %s176
          %s178 = smul.addr %s177, 8
          %s179 = scalar_lea.vmem %s2, %s178
          %s180 = smul.u32 2, %s20
        $region28: #{tpu_custom_call.1} parent=19 // pred_fallthru
          _
      $region20: #{tpu_custom_call.1} parent=5 // pred_fallthru
        _
      %p181 = scmp.le.s32.totalorder 1, %s12
      %p182 = scmp.lt.s32.totalorder %s12, 3
      %p183 = pnand %p181, %p182
      %p184 = pneg %p183
      // Predicated region
      $region29: #{tpu_custom_call.1} parent=5 // pred_check
        _
      $region30: #{tpu_custom_call.1} parent=5 // pred_check_branch
        %186 = sbr.rel (%p183) target = $region32
      $region31: #{tpu_custom_call.1} parent=5 // pred_region
        %s187 = ssub.s32 %s12, 1
        %p188 = scmp.lt.s32.totalorder %s21, 1
        %s189 = scalar_select %p188, %s21, 1
        %s190 = smul.addr %s189, 2
        %s191 = smul.addr %s190, 4
        %s192 = scalar_lea.vmem %s0, %s191
        %p193 = pneg %p50
        %p194 = pneg %p47
        %s195 = smul.u32 2, %s22
        %p196 = scmp.lt.s32.totalorder %s195, 1
        %s197 = scalar_select %p196, %s195, 1
        %s198 = smul.addr %s197, 4
        %s199 = scalar_lea.vmem %s1, %s198
        %p200 = pneg %p76
        %p201 = pneg %p73
        %s202 = smul.u32 2, %s22
        %p203 = scmp.lt.s32.totalorder %s21, 1
        %s204 = scalar_select %p203, %s21, 1
        %p205 = scmp.lt.s32.totalorder %s202, 1
        %s206 = scalar_select %p205, %s202, 1
        %s207 = smul.addr %s204, 4
        %s208 = sadd.s32 %s206, %s207
        %s209 = smul.addr %s208, 8
        %s210 = scalar_lea.vmem %s2, %s209
        %p211 = pneg %p104
        %p212 = pneg %p101
        %p213 = pneg %p132
        %p214 = pneg %p129
        %s215 = sand.u32 %s119, 1
        %s216 = scalar_lea.sflag [#allocation3], %s215
        %s217 = sand.u32 %s119, 1
        %s218 = smul.addr %s217, 8
        %s219 = scalar_lea.vmem [#allocation2], %s218
        %p220 = scmp.lt.s32.totalorder %s21, 1
        %s221 = scalar_select %p220, %s21, 1
        %s222 = smul.addr %s221, 2
        %s223 = smul.addr %s222, 4
        %s224 = scalar_lea.vmem %s0, %s223
        %s225 = smul.u32 2, %s22
        %p226 = scmp.lt.s32.totalorder %s225, 1
        %s227 = scalar_select %p226, %s225, 1
        %s228 = smul.addr %s227, 4
        %s229 = scalar_lea.vmem %s1, %s228
        %s230 = smul.u32 2, %s22
        %s231 = smul.u32 2, %s22
        %p232 = scmp.lt.s32.totalorder %s21, 1
        %s233 = scalar_select %p232, %s21, 1
        %p234 = scmp.lt.s32.totalorder %s231, 1
        %s235 = scalar_select %p234, %s231, 1
        %s236 = smul.addr %s233, 4
        %s237 = sadd.s32 %s235, %s236
        %s238 = smul.addr %s237, 8
        %s239 = scalar_lea.vmem %s2, %s238
        %s240 = smul.u32 2, %s22
        %v242 = vld [vmem:[%s229] sm:$0xf]
        %v243 = vld [vmem:[%s229 + $0x4] sm:$0xf]
        %v244 = vld [vmem:[%s224] sm:$0xf]
        %s245 = scalar_lea.vmem %s229, 8
        %v246 = vld [vmem:[%s245] sm:$0xf]
        %v247 = vld [vmem:[%s245 + $0x4] sm:$0xf]
        %v248 = vld [vmem:[%s224] sm:$0xff]
        %v251 = vunpack.c.l.b16 %v246
        %v252 = vunpack.c.l.b16 %v247
        %v253 = vpack.c.b16 %v252, %v251
        %v255 = vunpack.c.l.b16 %v248
        %v256 = vunpack.c.h.b16 %v248
        %v257 = vpack.c.b16 %v255, %v255
        %v258 = vpack.c.b16 %v256, %v256
        %259 = vrot.lane.b32.xlu0 %v257, 127
        %v260 = vpop.permute.xlu0 %259
        %261 = vrot.lane.b32.xlu0 %v258, 127
        %v262 = vpop.permute.xlu0 %261
        %vm263 = vcmask 1039360
        %v264 = vsel %vm263, %v260, %v262
        %vm265 = vcmask 64512
        %v267 = vsel %vm265, %v253, 0
        %vm269 = vcmask 1043456
        %v271 = vsel %vm269, %v264, 0
        %273 = vmatprep.subr.bf16.mxu0 0
        %274 = vmatpush1.bf16.msra.mxu0 0
        %275 = vmatprep.subr.bf16.mxu0 0
        %276 = vmatpush1.bf16.msra.mxu0 0
        %277 = vmatprep.subr.bf16.mxu0 0
        %278 = vmatpush1.bf16.msra.mxu0 0
        %279 = vmatprep.subr.bf16.mxu0 0
        %280 = vmatpush1.bf16.msra.mxu0 0
        %281 = vmatprep.subr.bf16.mxu0 0
        %282 = vmatpush1.bf16.msra.mxu0 0
        %283 = vmatprep.subr.bf16.mxu0 0
        %284 = vmatpush1.bf16.msra.mxu0 0
        %285 = vmatprep.subr.bf16.mxu0 0
        %286 = vmatpush1.bf16.msra.mxu0 0
        %287 = vmatprep.subr.bf16.mxu0 0
        %288 = vmatpush1.bf16.msra.mxu0 %v271
        %289 = vmatprep.subr.bf16.mxu0 0
        %290 = vmatpush2.bf16.msra.mxu0 0
        %291 = vmatprep.subr.bf16.mxu0 0
        %292 = vmatpush2.bf16.msra.mxu0 0
        %293 = vmatprep.subr.bf16.mxu0 0
        %294 = vmatpush2.bf16.msra.mxu0 0
        %295 = vmatprep.subr.bf16.mxu0 0
        %296 = vmatpush2.bf16.msra.mxu0 0
        %297 = vmatprep.subr.bf16.mxu0 0
        %298 = vmatpush2.bf16.msra.mxu0 0
        %299 = vmatprep.subr.bf16.mxu0 0
        %300 = vmatpush2.bf16.msra.mxu0 0
        %301 = vmatprep.subr.bf16.mxu0 0
        %302 = vmatpush2.bf16.msra.mxu0 0
        %303 = vmatprep.subr.bf16.mxu0 0
        %304 = vmatpush2.bf16.msra.mxu0 0
        %305 = vmatprep.mubr.bf16.mxu0 0
        %306 = vmatmul.mubr.bf16.gmra.mxu0 %v267
        %v307 = vpop.f32.mrf.mxu0
        %v308 = vadd.f32 0.0, %v307
        %v309 = vpop.f32.mrf.mxu0
        %v310 = vpop.f32.mrf.mxu0
        %v311 = vadd.f32 0.0, %v310
        %v312 = vpop.f32.mrf.mxu0
        %313 = vdwg.mxu0
        %v316 = vunpack.c.l.b16 %v242
        %v317 = vunpack.c.l.b16 %v243
        %v318 = vpack.c.b16 %v317, %v316
        %v320 = vsel %vm265, %v318, 0
        %v323 = vsel %vm269, %v244, 0
        %325 = vmatprep.subr.bf16.mxu0 0
        %326 = vmatpush1.bf16.msra.mxu0 0
        %327 = vmatprep.subr.bf16.mxu0 0
        %328 = vmatpush1.bf16.msra.mxu0 0
        %329 = vmatprep.subr.bf16.mxu0 0
        %330 = vmatpush1.bf16.msra.mxu0 0
        %331 = vmatprep.subr.bf16.mxu0 0
        %332 = vmatpush1.bf16.msra.mxu0 0
        %333 = vmatprep.subr.bf16.mxu0 0
        %334 = vmatpush1.bf16.msra.mxu0 0
        %335 = vmatprep.subr.bf16.mxu0 0
        %336 = vmatpush1.bf16.msra.mxu0 0
        %337 = vmatprep.subr.bf16.mxu0 0
        %338 = vmatpush1.bf16.msra.mxu0 0
        %339 = vmatprep.subr.bf16.mxu0 0
        %340 = vmatpush1.bf16.msra.mxu0 %v323
        %341 = vmatprep.subr.bf16.mxu0 0
        %342 = vmatpush2.bf16.msra.mxu0 0
        %343 = vmatprep.subr.bf16.mxu0 0
        %344 = vmatpush2.bf16.msra.mxu0 0
        %345 = vmatprep.subr.bf16.mxu0 0
        %346 = vmatpush2.bf16.msra.mxu0 0
        %347 = vmatprep.subr.bf16.mxu0 0
        %348 = vmatpush2.bf16.msra.mxu0 0
        %349 = vmatprep.subr.bf16.mxu0 0
        %350 = vmatpush2.bf16.msra.mxu0 0
        %351 = vmatprep.subr.bf16.mxu0 0
        %352 = vmatpush2.bf16.msra.mxu0 0
        %353 = vmatprep.subr.bf16.mxu0 0
        %354 = vmatpush2.bf16.msra.mxu0 0
        %355 = vmatprep.subr.bf16.mxu0 0
        %356 = vmatpush2.bf16.msra.mxu0 0
        %357 = vmatprep.mubr.bf16.mxu0 0
        %358 = vmatmul.mubr.bf16.gmra.mxu0 %v320
        %v359 = vpop.f32.mrf.mxu0
        %v360 = vadd.f32 %v308, %v359
        %v361 = vpop.f32.mrf.mxu0
        %v362 = vpop.f32.mrf.mxu0
        %v363 = vadd.f32 %v311, %v362
        %v364 = vpop.f32.mrf.mxu0
        %365 = vdwg.mxu0
        %s366 = scalar_lea.vmem %s229, 16
        %v367 = vld [vmem:[%s366] sm:$0xf]
        %v368 = vld [vmem:[%s366 + $0x4] sm:$0xf]
        %v371 = vunpack.c.l.b16 %v367
        %v372 = vunpack.c.l.b16 %v368
        %v373 = vpack.c.b16 %v372, %v371
        %374 = vrot.lane.b32.xlu0 %v257, 126
        %v375 = vpop.permute.xlu0 %374
        %376 = vrot.lane.b32.xlu0 %v258, 126
        %v377 = vpop.permute.xlu0 %376
        %vm378 = vcmask 1031168
        %v379 = vsel %vm378, %v375, %v377
        %v381 = vsel %vm265, %v373, 0
        %v384 = vsel %vm269, %v379, 0
        %386 = vmatprep.subr.bf16.mxu0 0
        %387 = vmatpush1.bf16.msra.mxu0 0
        %388 = vmatprep.subr.bf16.mxu0 0
        %389 = vmatpush1.bf16.msra.mxu0 0
        %390 = vmatprep.subr.bf16.mxu0 0
        %391 = vmatpush1.bf16.msra.mxu0 0
        %392 = vmatprep.subr.bf16.mxu0 0
        %393 = vmatpush1.bf16.msra.mxu0 0
        %394 = vmatprep.subr.bf16.mxu0 0
        %395 = vmatpush1.bf16.msra.mxu0 0
        %396 = vmatprep.subr.bf16.mxu0 0
        %397 = vmatpush1.bf16.msra.mxu0 0
        %398 = vmatprep.subr.bf16.mxu0 0
        %399 = vmatpush1.bf16.msra.mxu0 0
        %400 = vmatprep.subr.bf16.mxu0 0
        %401 = vmatpush1.bf16.msra.mxu0 %v384
        %402 = vmatprep.subr.bf16.mxu0 0
        %403 = vmatpush2.bf16.msra.mxu0 0
        %404 = vmatprep.subr.bf16.mxu0 0
        %405 = vmatpush2.bf16.msra.mxu0 0
        %406 = vmatprep.subr.bf16.mxu0 0
        %407 = vmatpush2.bf16.msra.mxu0 0
        %408 = vmatprep.subr.bf16.mxu0 0
        %409 = vmatpush2.bf16.msra.mxu0 0
        %410 = vmatprep.subr.bf16.mxu0 0
        %411 = vmatpush2.bf16.msra.mxu0 0
        %412 = vmatprep.subr.bf16.mxu0 0
        %413 = vmatpush2.bf16.msra.mxu0 0
        %414 = vmatprep.subr.bf16.mxu0 0
        %415 = vmatpush2.bf16.msra.mxu0 0
        %416 = vmatprep.subr.bf16.mxu0 0
        %417 = vmatpush2.bf16.msra.mxu0 0
        %418 = vmatprep.mubr.bf16.mxu0 0
        %419 = vmatmul.mubr.bf16.gmra.mxu0 %v381
        %v420 = vpop.f32.mrf.mxu0
        %v421 = vadd.f32 0.0, %v420
        %v422 = vpop.f32.mrf.mxu0
        %v423 = vpop.f32.mrf.mxu0
        %v424 = vadd.f32 0.0, %v423
        %v425 = vpop.f32.mrf.mxu0
        %426 = vdwg.mxu0
        %v427 = vadd.f32 %v360, %v421
        %v428 = vadd.f32 %v363, %v424
        %v429 = vlaneseq
        %v430 = vand.u32 %v429, 127
        %vm431 = vcmp.lt.s32.totalorder %v430, 16
        %v432 = vsel %vm431, 1, 0
        %v433 = vcvt.s32.f32 %v432
        %v434 = vmul.f32 %v427, %v433
        %v435 = vmul.f32 %v428, %v433
        %436 = vadd.xlane.f32.xlu0 %v434
        %v437 = vpop.xlane.xlu0 %436
        %438 = vadd.xlane.f32.xlu0 %v435
        %v439 = vpop.xlane.xlu0 %438
        %v440 = vmul.f32 %v437, 0.0625
        %v441 = vmul.f32 %v439, 0.0625
        %v442 = vsub.f32 %v427, %v440
        %v443 = vsub.f32 %v428, %v441
        %v444 = vmul.f32 %v442, %v442
        %v445 = vmul.f32 %v443, %v443
        %v446 = vmul.f32 %v444, %v433
        %v447 = vmul.f32 %v445, %v433
        %448 = vadd.xlane.f32.xlu0 %v446
        %v449 = vpop.xlane.xlu0 %448
        %450 = vadd.xlane.f32.xlu0 %v447
        %v451 = vpop.xlane.xlu0 %450
        %v452 = vmul.f32 %v449, 0.06666667
        %v453 = vmul.f32 %v451, 0.06666667
        %v454 = vadd.f32 %v452, 1e-05
        %v455 = vadd.f32 %v453, 1e-05
        %v456 = vrsqrt.pop %v454
        %v457 = vrsqrt.pop %v455
        %v458 = vmul.f32 %v442, %v456
        %v459 = vmul.f32 %v443, %v457
        %v460 = vld [vmem:[%s239] sm:$0xff]
        %v461 = vld [vmem:[%s239 + $0x8] sm:$0xff]
        %463 = vset.pattern.permute.xlu0 0
        %464 = vperm.xlu0 %463, %v460
        %v465 = vpop.permute.xlu0 %464
        %468 = vset.pattern.permute.xlu0 0
        %469 = vperm.xlu0 %468, %v461
        %v470 = vpop.permute.xlu0 %469
        %v472 = vmul.f32 %v465, %v458
        %v473 = vmul.f32 %v470, %v459
        %s474 = scalar_lea.vmem %s239, 16
        %v475 = vld [vmem:[%s474] sm:$0xff]
        %v476 = vld [vmem:[%s474 + $0x8] sm:$0xff]
        %478 = vset.pattern.permute.xlu0 0
        %479 = vperm.xlu0 %478, %v475
        %v480 = vpop.permute.xlu0 %479
        %483 = vset.pattern.permute.xlu0 0
        %484 = vperm.xlu0 %483, %v476
        %v485 = vpop.permute.xlu0 %484
        %v487 = vadd.f32 %v472, %v480
        %v488 = vadd.f32 %v473, %v485
        %v489 = vxor.u32 %v488, 2147483648
        %v490 = vmul.f32 %v489, 1.442695
        %v491 = vpow.pop %v490
        %v492 = vadd.f32 %v491, 1.0
        %v493 = vrcp.pop %v492
        %v494 = vmul.f32 1.0, %v493
        %v495 = vmul.f32 %v487, %v494
        %496 = vst [vmem:[%s219] sm:$0xff] %v495
        %s497 = sand.u32 %s119, 1
        %s498 = scalar_lea.sflag [#allocation3], %s497
        %s499 = sand.u32 %s119, 1
        %s500 = smul.addr %s499, 8
        %s501 = scalar_lea.vmem [#allocation2], %s500
        // Predicated region
        $region33: #{tpu_custom_call.1} parent=31 // pred_check
          %p502 = pneg %p129
        $region34: #{tpu_custom_call.1} parent=31 // pred_check_branch
          %504 = sbr.rel (%p502) target = $region36
        $region35: #{tpu_custom_call.1} parent=31 // pred_region
          %s506 = ssub.s32 128, 128
          %507 = vsyncadd %s498, %s506
          %s508 = sadd.s32 %s22, %s21
          %s509 = smul.addr %s508, 128
          %s510 = scalar_lea.hbm %s3, %s509
          %s512 = sshll.u32 %s501, 4
          %s513 = int_to_ptr.vmem [resolvable:$true] %s512
          %515 = dma.vmem_to_hbm [thread:$0]  %s513, 128, %s510, %s498
        $region36: #{tpu_custom_call.1} parent=31 // pred_fallthru
          _
      $region32: #{tpu_custom_call.1} parent=5 // pred_fallthru
        _
      %p516 = scmp.le.s32.totalorder 2, %s12
      // Predicated region
      $region37: #{tpu_custom_call.1} parent=5 // pred_check
        %p517 = pneg %p516
      $region38: #{tpu_custom_call.1} parent=5 // pred_check_branch
        %519 = sbr.rel (%p517) target = $region40
      $region39: #{tpu_custom_call.1} parent=5 // pred_region
        %s520 = ssub.s32 %s12, 2
        // Predicated region
        $region41: #{tpu_custom_call.1} parent=39 // pred_check
          %p521 = pneg %p135
        $region42: #{tpu_custom_call.1} parent=39 // pred_check_branch
          %523 = sbr.rel (%p521) target = $region44
        $region43: #{tpu_custom_call.1} parent=39 // pred_region
          %s524 = sand.u32 %s120, 1
          %s525 = scalar_lea.sflag [#allocation3], %s524
          %s526 = sand.u32 %s120, 1
          %s527 = smul.addr %s526, 8
          %s528 = scalar_lea.vmem [#allocation2], %s527
          %529 = dma.done %s525, 128
        $region44: #{tpu_custom_call.1} parent=39 // pred_fallthru
          _
      $region40: #{tpu_custom_call.1} parent=5 // pred_fallthru
        _
    $region6: #{tpu_custom_call.1} parent=1 // loop_footer
      %s16 = sadd.s32 1, %s12
    $region7: #{tpu_custom_call.1} parent=1 // loop_footer_branch
      %11 = sbr.rel target = $region3
    $region8: #{tpu_custom_call.1} parent=1 // loop_exit
      _
    %530 = vsyncpa [#allocation3], 1
    %s531 = scalar_lea.sflag [#allocation3], 1
    %532 = vsyncpa %s531, 1

</llo_original>
